<compile_context>
chip_gen: v6e
topology: v6e:2x2x1
jax: 0.10.0
libtpu: 0.0.40
codegen_flags: <defaults>
</compile_context>

<pallas_src>
import functools

import numpy as np
import jax
import jax.numpy as jnp
from jax.experimental import pallas as pl
from jax.experimental.pallas import tpu as pltpu


# ----------------------------- parameter setup (glue) -----------------------------

def precompute_expk(n, dtype=jnp.float32):
    """Mirrors openparf precomputeExpk: expk[k] = [cos(pi*k/(2n)), sin(pi*k/(2n))], shape (n, 2)."""
    k = jnp.arange(n, dtype=dtype) * (np.pi / (2.0 * n))
    return jnp.stack([jnp.cos(k), jnp.sin(k)], axis=-1)


def idct3_basis(n, expk):
    """basis[i, u] = (2/n) * w_u * cos(pi*u*(2i+1)/(2n)), w_0 = 0.5 else 1.  Shape (n, n)."""
    i = jnp.arange(n, dtype=jnp.float32)[:, None]   # (n, 1)
    u = jnp.arange(n, dtype=jnp.float32)[None, :]   # (1, n)
    # cos(pi*u*(2i+1)/(2n)) = cos(pi*u*i/n)*cos(pi*u/(2n)) - sin(pi*u*i/n)*sin(pi*u/(2n))
    ang = jnp.pi * u * i / n
    basis = jnp.cos(ang) * expk[None, :, 0].astype(jnp.float32) \
        - jnp.sin(ang) * expk[None, :, 1].astype(jnp.float32)
    w = jnp.where(u == 0, 0.5, 1.0)
    return (2.0 / n) * w * basis


_BASIS_CACHE = {}


def _get_bases(M, N, Mp, Np, in_dtype, comp_dtype, expkM=None, expkN=None):
    """Cache the (padded) dense IDCT bases per (M, N, Mp, Np, dtype)."""
    key = (int(M), int(N), int(Mp), int(Np),
           jnp.dtype(in_dtype).name, jnp.dtype(comp_dtype).name)
    hit = _BASIS_CACHE.get(key)
    if hit is not None:
        return hit
    if expkM is None or expkM.shape[-2] != M or expkM.dtype != in_dtype:
        expkM = precompute_expk(M, in_dtype)
    if expkN is None or expkN.shape[-2] != N or expkN.dtype != in_dtype:
        expkN = precompute_expk(N, in_dtype)
    A = idct3_basis(M, expkM)          # (M, M): A[i, u]
    B = idct3_basis(N, expkN).T        # (N, N): B[v, j]
    if Mp != M:
        A = jnp.pad(A, ((0, Mp - M), (0, Mp - M)))
    if Np != N:
        B = jnp.pad(B, ((0, Np - N), (0, Np - N)))
    A = jax.block_until_ready(jax.device_put(A.astype(comp_dtype)))
    B = jax.block_until_ready(jax.device_put(B.astype(comp_dtype)))
    _BASIS_CACHE[key] = (A, B)
    return A, B


def _round_up(x, m):
    return ((x + m - 1) // m) * m


def _pick_tile(dim, target, align):
    """Largest divisor of `dim` that is <= target and a multiple of `align`;
    full-extent fallback (only reachable for un-padded pathological dims)."""
    t = min(int(target), int(dim))
    t -= t % align
    while t >= align:
        if dim % t == 0:
            return t
        t -= align
    return int(dim)


@functools.lru_cache(maxsize=1)
def _vmem_capacity_bytes():
    try:
        return int(pltpu.get_tpu_info().vmem_capacity_bytes)
    except Exception:
        return 64 << 20   # conservative: v7x per-TensorCore VMEM


# ----------------------------- Pallas kernel (hot path) ---------------------------

def _idct2_kernel(a_ref, x_ref, b_ref, o_ref, t_ref):
    # Grid: (i over row tiles [parallel], j over column tiles [arbitrary, innermost]).
    #   a_ref: (tm, Mp) row-basis tile         (compute dtype)
    #   x_ref: (Mp, Np) full input, resident   (compute dtype)
    #   b_ref: (Np, tn) column-basis tile      (compute dtype)
    #   o_ref: (tm, tn) output tile            (input dtype)
    #   t_ref: (tm, Np) VMEM scratch caching t = A_tile @ x across the j sweep.
    @pl.when(pl.program_id(1) == 0)
    def _():
        t_ref[...] = jnp.dot(
            a_ref[...], x_ref[...], preferred_element_type=jnp.float32
        ).astype(t_ref.dtype)

    o_ref[...] = jnp.dot(
        t_ref[...], b_ref[...], preferred_element_type=jnp.float32
    ).astype(o_ref.dtype)


_X_SINGLE_BUFFER_OK = None   # None: untried; True/False after the first attempt


def idct2(x, expkM=None, expkN=None, *, tm=256, tn=None, use_bf16=True,
          intermediate_f32=False):
    assert x.ndim == 2, "Idct2 operates on a single (M, N) map"
    M, N = x.shape

    comp_dtype = jnp.bfloat16 if use_bf16 else x.dtype
    t_dtype = jnp.float32 if intermediate_f32 else comp_dtype
    itemsize = jnp.dtype(comp_dtype).itemsize
    t_itemsize = jnp.dtype(t_dtype).itemsize
    out_itemsize = jnp.dtype(x.dtype).itemsize

    # bf16 packs two rows per sublane -> keep the row tile a multiple of 16.
    align_m = 16 if jnp.dtype(comp_dtype) == jnp.dtype(jnp.bfloat16) else 8

    # Pad awkward sizes up to tileable extents instead of falling back to
    # full-extent (M,M)/(N,N) blocks; the zero-padded rows/cols are sliced off.
    Mp = _round_up(M, align_m)
    Np = _round_up(N, 128)

    cap = _vmem_capacity_bytes()
    if tn is None:
        # Wider column tile on 128 MiB-VMEM chips (v5e/v6e); v7x (64 MiB) stays at 512.
        tn = 1024 if cap >= (96 << 20) else 512

    # Keep >= 2 row blocks so the "parallel" i axis can shard across both
    # TensorCores on v7x megacore.
    tm_target = tm
    if Mp >= 2 * align_m:
        tm_target = min(tm_target, Mp // 2)
    tm = _pick_tile(Mp, tm_target, align_m)
    tn = _pick_tile(Np, tn, 128)

    # VMEM budgeting (x single-buffered; A/B/out double-buffered; t scratch).
    budget = int(cap * 0.85)

    def _need(tm_, tn_, x_bufs):
        return (2 * (tm_ * Mp + Np * tn_) * itemsize
                + x_bufs * Mp * Np * itemsize
                + 2 * tm_ * tn_ * out_itemsize
                + tm_ * Np * t_itemsize)

    while _need(tm, tn, 1) > budget and tn > 128:
        tn = _pick_tile(Np, max(tn // 2, 128), 128)
    while _need(tm, tn, 1) > budget and tm > align_m:
        tm = _pick_tile(Mp, max(tm // 2, align_m), align_m)
    # TODO(synk): if the resident (Mp, Np) x block alone ever exceeds the VMEM
    # budget (multi-k maps on v7x), stream x in M-chunks with pltpu.emit_pipeline
    # inside the j == 0 branch instead of keeping it resident.

    vmem_limit = int(min(max(int(_need(tm, tn, 2) * 1.25) + (2 << 20), 16 << 20),
                         cap - (4 << 20)))

    A, B = _get_bases(M, N, Mp, Np, x.dtype, comp_dtype, expkM, expkN)

    xc = x.astype(comp_dtype)
    # TODO(synk): on v5e the standalone bf16 cast of x is an extra HBM pass; fuse
    # it into the producer or cast in-kernel if it ever shows up in profiles.
    if (Mp != M) or (Np != N):
        xc = jnp.pad(xc, ((0, Mp - M), (0, Np - N)))

    cost = pl.CostEstimate(
        flops=2 * Mp * Mp * Np + 2 * Mp * Np * Np,
        transcendentals=0,
        bytes_accessed=(Mp * Mp + 2 * Mp * Np + Np * Np) * itemsize
        + Mp * Np * out_itemsize,
    )

    def _run(single_buffer_x):
        if single_buffer_x:
            # Constant index map -> a second pipeline buffer is pure VMEM waste.
            x_spec = pl.BlockSpec((Mp, Np), lambda i, j: (0, 0),
                                  pipeline_mode=pl.Buffered(buffer_count=1))
        else:
            x_spec = pl.BlockSpec((Mp, Np), lambda i, j: (0, 0))
        return pl.pallas_call(
            _idct2_kernel,
            out_shape=jax.ShapeDtypeStruct((Mp, Np), x.dtype),
            grid=(Mp // tm, Np // tn),
            in_specs=[
                pl.BlockSpec((tm, Mp), lambda i, j: (i, 0)),   # row-basis tile
                x_spec,                                        # full x (resident)
                pl.BlockSpec((Np, tn), lambda i, j: (0, j)),   # column-basis tile
            ],
            out_specs=pl.BlockSpec((tm, tn), lambda i, j: (i, j)),
            scratch_shapes=[pltpu.VMEM((tm, Np), t_dtype)],
            compiler_params=pltpu.CompilerParams(
                # j carries the cached t = A_tile @ x dependency -> "arbitrary";
                # the i axis is megacore-shardable.
                dimension_semantics=("parallel", "arbitrary"),
                vmem_limit_bytes=vmem_limit,
            ),
            cost_estimate=cost,
        )(A, xc, B)

    global _X_SINGLE_BUFFER_OK
    if _X_SINGLE_BUFFER_OK is None:
        try:
            out = _run(True)
            _X_SINGLE_BUFFER_OK = True
        except Exception:
            # This JAX build rejected single-buffering x; fall back to the
            # default (double-buffered) spec, which is always legal.
            _X_SINGLE_BUFFER_OK = False
            out = _run(False)
    else:
        out = _run(_X_SINGLE_BUFFER_OK)

    if (Mp != M) or (Np != N):
        out = out[:M, :N]
    return out


class Idct2:
    """Thin wrapper mirroring the nn.Module interface (expk tables built lazily)."""

    def __init__(self, expkM=None, expkN=None):
        self.expkM = expkM
        self.expkN = expkN

    def __call__(self, x):
        M, N = x.shape[-2], x.shape[-1]
        if self.expkM is None or self.expkM.shape[-2] != M or self.expkM.dtype != x.dtype:
            self.expkM = precompute_expk(M, x.dtype)
        if self.expkN is None or self.expkN.shape[-2] != N or self.expkN.dtype != x.dtype:
            self.expkN = precompute_expk(N, x.dtype)
        return idct2(x, self.expkM, self.expkN)


# ----------------------------------- test ----------------------------------------

def _numpy_ref(xn):
    M, N = xn.shape
    i = np.arange(M); u = np.arange(M)
    j = np.arange(N); v = np.arange(N)
    cM = np.cos(np.pi * np.outer(u, 2 * i + 1) / (2.0 * M))   # (u, i)
    cN = np.cos(np.pi * np.outer(v, 2 * j + 1) / (2.0 * N))   # (v, j)
    wM = np.where(u == 0, 0.5, 1.0)[:, None]
    wN = np.where(v == 0, 0.5, 1.0)[:, None]
    return (4.0 / (M * N)) * ((wM * cM).T @ xn @ (wN * cN))


if __name__ == "__main__":
    key = jax.random.PRNGKey(0)
    k1, k2, k3 = jax.random.split(key, 3)

    # Test 1: module-style call; tm is auto-clamped to M//2 so the parallel
    # row axis has 2 blocks even at this small size.
    M, N = 64, 128
    x = jax.random.normal(k1, (M, N), dtype=jnp.float32)
    out = jax.block_until_ready(Idct2()(x))
    assert out.shape == (M, N) and out.dtype == x.dtype
    ref = _numpy_ref(np.asarray(x, dtype=np.float64))
    rel = np.linalg.norm(np.asarray(out, np.float64) - ref) / np.linalg.norm(ref)
    assert rel < 1e-2, f"relative error too large (test 1): {rel}"

    # Test 2: force a (2, 2) grid to exercise the cached-intermediate path
    # (pl.when(j == 0) init + reuse across the column sweep).
    M2, N2 = 64, 256
    x2 = jax.random.normal(k2, (M2, N2), dtype=jnp.float32)
    out2 = jax.block_until_ready(idct2(x2, tm=32, tn=128))
    ref2 = _numpy_ref(np.asarray(x2, dtype=np.float64))
    rel2 = np.linalg.norm(np.asarray(out2, np.float64) - ref2) / np.linalg.norm(ref2)
    assert rel2 < 1e-2, f"relative error too large (test 2): {rel2}"

    # Test 3: awkward (non-aligned) sizes exercise the pad-and-slice path.
    M3, N3 = 60, 200
    x3 = jax.random.normal(k3, (M3, N3), dtype=jnp.float32)
    out3 = jax.block_until_ready(idct2(x3))
    assert out3.shape == (M3, N3)
    ref3 = _numpy_ref(np.asarray(x3, dtype=np.float64))
    rel3 = np.linalg.norm(np.asarray(out3, np.float64) - ref3) / np.linalg.norm(ref3)
    assert rel3 < 1e-2, f"relative error too large (test 3): {rel3}"

    print("KERNEL_OK")
</pallas_src>

<mosaic_0001>
module attributes {stable_mosaic.version = 11 : i64} {
  func.func @_idct2_kernel(%arg0: i32, %arg1: i32, %arg2: memref<32x64xbf16, #tpu.memory_space<vmem>>, %arg3: memref<64x128xbf16, #tpu.memory_space<vmem>>, %arg4: memref<128x128xbf16, #tpu.memory_space<vmem>>, %arg5: memref<32x128xf32, #tpu.memory_space<vmem>>, %arg6: memref<32x128xbf16, #tpu.memory_space<vmem>>) attributes {dimension_semantics = [#tpu.dimension_semantics<parallel>, #tpu.dimension_semantics<arbitrary>], iteration_bounds = array<i64: 2, 1>, scalar_prefetch = 0 : i64, scratch_operands = 1 : i64, tpu.core_type = #tpu.core_type<tc>, window_params = [{transform_indices = @transform_0, window_bounds = array<i64: 32, 64>}, {pipeline_mode = #tpu.pipeline_mode<synchronous>, transform_indices = @transform_1, window_bounds = array<i64: 64, 128>}, {transform_indices = @transform_2, window_bounds = array<i64: 128, 128>}, {transform_indices = @transform_3, window_bounds = array<i64: 32, 128>}]} {
    %c0_i32 = arith.constant 0 : i32
    %0 = arith.cmpi eq, %arg1, %c0_i32 : i32
    %1 = arith.extui %0 : i1 to i32
    %c0_i32_0 = arith.constant 0 : i32
    %2 = arith.cmpi ne, %1, %c0_i32_0 : i32
    scf.if %2 {
      %c0_6 = arith.constant 0 : index
      %c0_7 = arith.constant 0 : index
      %7 = vector.load %arg2[%c0_6, %c0_7] : memref<32x64xbf16, #tpu.memory_space<vmem>>, vector<32x64xbf16>
      %c0_8 = arith.constant 0 : index
      %c0_9 = arith.constant 0 : index
      %8 = vector.load %arg3[%c0_8, %c0_9] : memref<64x128xbf16, #tpu.memory_space<vmem>>, vector<64x128xbf16>
      %cst_10 = arith.constant dense<0.000000e+00> : vector<32x128xf32>
      %9 = tpu.matmul %7, %8, %cst_10 {dimension_numbers = #tpu.dot_dimension_numbers<[1], [0], [0], [1], [0, 0, 1, 1], [], []>} : vector<32x64xbf16>, vector<64x128xbf16>, vector<32x128xf32> -> vector<32x128xf32>
      %10 = arith.truncf %9 : vector<32x128xf32> to vector<32x128xbf16>
      %c0_11 = arith.constant 0 : index
      %c0_12 = arith.constant 0 : index
      %11 = vector.load %arg6[%c0_11, %c0_12] : memref<32x128xbf16, #tpu.memory_space<vmem>>, vector<32x128xbf16>
      tpu.vector_store %arg6[%c0_11, %c0_12], %10 {strides = array<i32>} : memref<32x128xbf16, #tpu.memory_space<vmem>>, vector<32x128xbf16>,
    } else {
    }
    %c0 = arith.constant 0 : index
    %c0_1 = arith.constant 0 : index
    %3 = vector.load %arg6[%c0, %c0_1] : memref<32x128xbf16, #tpu.memory_space<vmem>>, vector<32x128xbf16>
    %c0_2 = arith.constant 0 : index
    %c0_3 = arith.constant 0 : index
    %4 = vector.load %arg4[%c0_2, %c0_3] : memref<128x128xbf16, #tpu.memory_space<vmem>>, vector<128x128xbf16>
    %cst = arith.constant dense<0.000000e+00> : vector<32x128xf32>
    %5 = tpu.matmul %3, %4, %cst {dimension_numbers = #tpu.dot_dimension_numbers<[1], [0], [0], [1], [0, 0, 1, 1], [], []>} : vector<32x128xbf16>, vector<128x128xbf16>, vector<32x128xf32> -> vector<32x128xf32>
    %c0_4 = arith.constant 0 : index
    %c0_5 = arith.constant 0 : index
    %6 = vector.load %arg5[%c0_4, %c0_5] : memref<32x128xf32, #tpu.memory_space<vmem>>, vector<32x128xf32>
    tpu.vector_store %arg5[%c0_4, %c0_5], %5 {strides = array<i32>} : memref<32x128xf32, #tpu.memory_space<vmem>>, vector<32x128xf32>,
    return
  }
  func.func @transform_0(%arg0: i32, %arg1: i32) -> (i32, i32) {
    %c0_i32 = arith.constant 0 : i32
    %c0_i32_0 = arith.constant 0 : i32
    return %arg0, %c0_i32 : i32, i32
  }
  func.func @transform_1(%arg0: i32, %arg1: i32) -> (i32, i32) {
    %c0_i32 = arith.constant 0 : i32
    %c0_i32_0 = arith.constant 0 : i32
    %c0_i32_1 = arith.constant 0 : i32
    return %c0_i32, %c0_i32_0 : i32, i32
  }
  func.func @transform_2(%arg0: i32, %arg1: i32) -> (i32, i32) {
    %c0_i32 = arith.constant 0 : i32
    %c0_i32_0 = arith.constant 0 : i32
    return %c0_i32, %arg1 : i32, i32
  }
  func.func @transform_3(%arg0: i32, %arg1: i32) -> (i32, i32) {
    %c0_i32 = arith.constant 0 : i32
    return %arg0, %arg1 : i32, i32
  }
}

module attributes {stable_mosaic.version = 11 : i64} {
  func.func @_idct2_kernel(%arg0: i32, %arg1: i32, %arg2: memref<32x64xbf16, #tpu.memory_space<vmem>>, %arg3: memref<64x128xbf16, #tpu.memory_space<vmem>>, %arg4: memref<128x128xbf16, #tpu.memory_space<vmem>>, %arg5: memref<32x128xf32, #tpu.memory_space<vmem>>, %arg6: memref<32x128xbf16, #tpu.memory_space<vmem>>) attributes {dimension_semantics = [#tpu.dimension_semantics<parallel>, #tpu.dimension_semantics<arbitrary>], iteration_bounds = array<i64: 2, 1>, scalar_prefetch = 0 : i64, scratch_operands = 1 : i64, tpu.core_type = #tpu.core_type<tc>, window_params = [{transform_indices = @transform_0, window_bounds = array<i64: 32, 64>}, {pipeline_mode = #tpu.pipeline_mode<synchronous>, transform_indices = @transform_1, window_bounds = array<i64: 64, 128>}, {transform_indices = @transform_2, window_bounds = array<i64: 128, 128>}, {transform_indices = @transform_3, window_bounds = array<i64: 32, 128>}]} {
    %c0_i32 = arith.constant 0 : i32
    %0 = arith.cmpi eq, %arg1, %c0_i32 : i32
    %1 = arith.extui %0 : i1 to i32
    %c0_i32_0 = arith.constant 0 : i32
    %2 = arith.cmpi ne, %1, %c0_i32_0 : i32
    scf.if %2 {
      %c0_6 = arith.constant 0 : index
      %c0_7 = arith.constant 0 : index
      %7 = vector.load %arg2[%c0_6, %c0_7] : memref<32x64xbf16, #tpu.memory_space<vmem>>, vector<32x64xbf16>
      %c0_8 = arith.constant 0 : index
      %c0_9 = arith.constant 0 : index
      %8 = vector.load %arg3[%c0_8, %c0_9] : memref<64x128xbf16, #tpu.memory_space<vmem>>, vector<64x128xbf16>
      %cst_10 = arith.constant dense<0.000000e+00> : vector<32x128xf32>
      %9 = tpu.matmul %7, %8, %cst_10 {dimension_numbers = #tpu.dot_dimension_numbers<[1], [0], [0], [1], [0, 0, 1, 1], [], []>} : vector<32x64xbf16>, vector<64x128xbf16>, vector<32x128xf32> -> vector<32x128xf32>
      %10 = arith.truncf %9 : vector<32x128xf32> to vector<32x128xbf16>
      %c0_11 = arith.constant 0 : index
      %c0_12 = arith.constant 0 : index
      %11 = vector.load %arg6[%c0_11, %c0_12] : memref<32x128xbf16, #tpu.memory_space<vmem>>, vector<32x128xbf16>
      tpu.vector_store %arg6[%c0_11, %c0_12], %10 {strides = array<i32>} : memref<32x128xbf16, #tpu.memory_space<vmem>>, vector<32x128xbf16>,
    } else {
    }
    %c0 = arith.constant 0 : index
    %c0_1 = arith.constant 0 : index
    %3 = vector.load %arg6[%c0, %c0_1] : memref<32x128xbf16, #tpu.memory_space<vmem>>, vector<32x128xbf16>
    %c0_2 = arith.constant 0 : index
    %c0_3 = arith.constant 0 : index
    %4 = vector.load %arg4[%c0_2, %c0_3] : memref<128x128xbf16, #tpu.memory_space<vmem>>, vector<128x128xbf16>
    %cst = arith.constant dense<0.000000e+00> : vector<32x128xf32>
    %5 = tpu.matmul %3, %4, %cst {dimension_numbers = #tpu.dot_dimension_numbers<[1], [0], [0], [1], [0, 0, 1, 1], [], []>} : vector<32x128xbf16>, vector<128x128xbf16>, vector<32x128xf32> -> vector<32x128xf32>
    %c0_4 = arith.constant 0 : index
    %c0_5 = arith.constant 0 : index
    %6 = vector.load %arg5[%c0_4, %c0_5] : memref<32x128xf32, #tpu.memory_space<vmem>>, vector<32x128xf32>
    tpu.vector_store %arg5[%c0_4, %c0_5], %5 {strides = array<i32>} : memref<32x128xf32, #tpu.memory_space<vmem>>, vector<32x128xf32>,
    return
  }
  func.func @transform_0(%arg0: i32, %arg1: i32) -> (i32, i32) {
    %c0_i32 = arith.constant 0 : i32
    %c0_i32_0 = arith.constant 0 : i32
    return %arg0, %c0_i32 : i32, i32
  }
  func.func @transform_1(%arg0: i32, %arg1: i32) -> (i32, i32) {
    %c0_i32 = arith.constant 0 : i32
    %c0_i32_0 = arith.constant 0 : i32
    %c0_i32_1 = arith.constant 0 : i32
    return %c0_i32, %c0_i32_0 : i32, i32
  }
  func.func @transform_2(%arg0: i32, %arg1: i32) -> (i32, i32) {
    %c0_i32 = arith.constant 0 : i32
    %c0_i32_0 = arith.constant 0 : i32
    return %c0_i32, %arg1 : i32, i32
  }
  func.func @transform_3(%arg0: i32, %arg1: i32) -> (i32, i32) {
    %c0_i32 = arith.constant 0 : i32
    return %arg0, %arg1 : i32, i32
  }
}

</mosaic_0001>

<llo_original>
// kernel: tpu_custom_call.1
$region0: #{tpu_custom_call.1}
  #allocation0 [shape = 'u32[]', space=smem, size = 0x4, offset = 0x4, fixed_abs, tag = 'smem constant byte address 0x4 - core index']
  #allocation1 [shape = 'u32[144,128]{1,0:T(1,128)}', space=vmem, size = 0x12000, scoped, tag = 'internal scratch']
  #allocation2 [shape = 'bf16[32,128]{1,0:T(8,128)(2,1)}', space=vmem, size = 0x2000, scoped, tag = 'scratch operand']
  %s0 = inlined_call_operand.hbm [shape: bf16[64,64], index: 0, kind: input, shape index: {}]
  %s1 = inlined_call_operand.hbm [shape: bf16[64,128], index: 1, kind: input, shape index: {}]
  %s2 = inlined_call_operand.hbm [shape: bf16[128,128], index: 2, kind: input, shape index: {}]
  %s3 = inlined_call_operand.hbm [shape: f32[64,128], index: 3, kind: output, shape index: {}]
  %s4 = sld [smem:[#allocation0]]
  $region61: #{tpu_custom_call.1} parent=0
    _
  %s6 = ssub.s32 1, %s4
  %s7 = scalar_select 0, %s6, %s4
  $region1: #{tpu_custom_call.1} parent=0
    #allocation3 [shape = 'u8[16384]{0}', space=vmem, size = 0x4000, scoped, tag = 'input window, operand 0']
    #allocation4 [shape = 's32[2]{0}', space=sflag, size = 0x8, scoped, tag = 'scoped memory for tpu_custom_call.1']
    #allocation5 [shape = 's32[2]{0}', space=sflag, size = 0x8, scoped, tag = 'scoped memory for tpu_custom_call.1']
    #allocation6 [shape = 'u8[16384]{0}', space=vmem, size = 0x4000, scoped, tag = 'input window, operand 1, single buffered']
    #allocation7 [shape = 's32[1]{0}', space=sflag, size = 0x4, scoped, tag = 'scoped memory for tpu_custom_call.1']
    #allocation8 [shape = 'u8[32768]{0}', space=vmem, size = 0x8000, scoped, tag = 'input window, operand 2, single buffered']
    #allocation9 [shape = 'u8[32768]{0}', space=vmem, size = 0x8000, scoped, tag = 'output window, operand 0']
    %8 = vsyncpa [#allocation4], 0
    %s9 = scalar_lea.sflag [#allocation4], 1
    %10 = vsyncpa %s9, 0
    %11 = vsyncpa [#allocation7], 0
    %12 = vsyncpa [#allocation5], 0
    %s13 = scalar_lea.sflag [#allocation5], 1
    %14 = vsyncpa %s13, 0
    loop: start=0, step=1, limit=4
    $region2: #{tpu_custom_call.1} parent=1 // loop_pre_header
      _
    $region3: #{tpu_custom_call.1} parent=1 // loop_header
      %s16 = sphi 0, %s20
      %p17 = scmp.ge.s32.totalorder %s16, 4
      %s23 = sphi 0, %s35
      %s24 = sphi 0, %s31
      %s25 = sphi 0, %s23
      %s26 = sphi 0, %s24
      %s27 = sphi 0, %s25
      %s28 = sphi 0, %s26
      %s38 = sphi 0, %s40
      %s41 = sphi 0, %s38
      %s42 = sphi 0, %s41
      %s58 = sphi 0, %s42
      %s62 = sphi 0, %s62
      %s64 = sphi 0, %s62
      %s65 = sphi 0, %s64
      %s79 = sphi 0, %s65
      %s85 = sphi 0, %s87
      %s88 = sphi 0, %s85
      %s89 = sphi 0, %s88
      %s105 = sphi 0, %s89
      %s113 = sphi 0, %s115
      %s116 = sphi 0, %s113
      %s117 = sphi 0, %s116
      %s133 = sphi 0, %s117
    $region4: #{tpu_custom_call.1} parent=1 // loop_header_branch
      %19 = sbr.rel (%p17) target = $region8
    $region5: #{tpu_custom_call.1} parent=1 // loop_body
      %s21 = ssub.s32 %s16, 1
      %s22 = ssub.s32 %s16, 2
      %s29 = sadd.s32 1, %s24
      %p30 = scmp.ge.s32.totalorder %s29, 1
      %s31 = scalar_select %p30, 0, %s29
      %s32 = sadd.s32 1, %s23
      %s33 = scalar_select %p30, %s32, %s23
      %p34 = scmp.ge.s32.totalorder %s33, 2
      %s35 = scalar_select %p34, 0, %s33
      %s36 = ssub.s32 %s23, %s35
      %p37 = scmp.eq.s32.totalorder %s36, 0
      %s39 = sadd.s32 %s38, 1
      %s40 = scalar_select %p37, %s38, %s39
      %p43 = pneg %p37
      %p44 = scmp.eq.s32.totalorder %s16, 1
      %p45 = por %p43, %p44
      %p46 = scmp.ne.s32.totalorder %s38, %s41
      %p47 = scmp.eq.s32.totalorder %s16, 0
      %p48 = por %p46, %p47
      %p49 = scmp.ne.s32.totalorder %s38, %s41
      %p50 = scmp.eq.s32.totalorder %s21, 1
      %p51 = por %p49, %p50
      %p52 = scmp.ne.s32.totalorder %s41, %s42
      %p53 = scmp.eq.s32.totalorder %s21, 0
      %p54 = por %p52, %p53
      %p55 = scmp.ne.s32.totalorder %s41, %s42
      %p56 = scmp.eq.s32.totalorder %s22, 1
      %p57 = por %p55, %p56
      %p59 = scmp.ne.s32.totalorder %s42, %s58
      %p60 = scmp.eq.s32.totalorder %s22, 0
      %p61 = por %p59, %p60
      %s63 = sadd.s32 %s62, 1
      %p66 = scmp.eq.s32.totalorder %s16, 1
      %p67 = scmp.ne.s32.totalorder %s62, %s64
      %p68 = scmp.eq.s32.totalorder %s16, 0
      %p69 = por %p67, %p68
      %p70 = scmp.ne.s32.totalorder %s62, %s64
      %p71 = scmp.eq.s32.totalorder %s21, 1
      %p72 = por %p70, %p71
      %p73 = scmp.ne.s32.totalorder %s64, %s65
      %p74 = scmp.eq.s32.totalorder %s21, 0
      %p75 = por %p73, %p74
      %p76 = scmp.ne.s32.totalorder %s64, %s65
      %p77 = scmp.eq.s32.totalorder %s22, 1
      %p78 = por %p76, %p77
      %p80 = scmp.ne.s32.totalorder %s65, %s79
      %p81 = scmp.eq.s32.totalorder %s22, 0
      %p82 = por %p80, %p81
      %s83 = ssub.s32 %s24, %s31
      %p84 = scmp.eq.s32.totalorder %s83, 0
      %s86 = sadd.s32 %s85, 1
      %s87 = scalar_select %p84, %s85, %s86
      %p90 = pneg %p84
      %p91 = scmp.eq.s32.totalorder %s16, 1
      %p92 = por %p90, %p91
      %p93 = scmp.ne.s32.totalorder %s85, %s88
      %p94 = scmp.eq.s32.totalorder %s16, 0
      %p95 = por %p93, %p94
      %p96 = scmp.ne.s32.totalorder %s85, %s88
      %p97 = scmp.eq.s32.totalorder %s21, 1
      %p98 = por %p96, %p97
      %p99 = scmp.ne.s32.totalorder %s88, %s89
      %p100 = scmp.eq.s32.totalorder %s21, 0
      %p101 = por %p99, %p100
      %p102 = scmp.ne.s32.totalorder %s88, %s89
      %p103 = scmp.eq.s32.totalorder %s22, 1
      %p104 = por %p102, %p103
      %p106 = scmp.ne.s32.totalorder %s89, %s105
      %p107 = scmp.eq.s32.totalorder %s22, 0
      %p108 = por %p106, %p107
      %s109 = ssub.s32 %s23, %s35
      %s110 = ssub.s32 %s24, %s31
      %s111 = sor.u32 %s109, %s110
      %p112 = scmp.eq.s32.totalorder %s111, 0
      %s114 = sadd.s32 %s113, 1
      %s115 = scalar_select %p112, %s113, %s114
      %p118 = pneg %p112
      %p119 = scmp.eq.s32.totalorder %s16, 1
      %p120 = por %p118, %p119
      %p121 = scmp.ne.s32.totalorder %s113, %s116
      %p122 = scmp.eq.s32.totalorder %s16, 0
      %p123 = por %p121, %p122
      %p124 = scmp.ne.s32.totalorder %s113, %s116
      %p125 = scmp.eq.s32.totalorder %s21, 1
      %p126 = por %p124, %p125
      %p127 = scmp.ne.s32.totalorder %s116, %s117
      %p128 = scmp.eq.s32.totalorder %s21, 0
      %p129 = por %p127, %p128
      %p130 = scmp.ne.s32.totalorder %s116, %s117
      %p131 = scmp.eq.s32.totalorder %s22, 1
      %p132 = por %p130, %p131
      %p134 = scmp.ne.s32.totalorder %s117, %s133
      %p135 = scmp.eq.s32.totalorder %s22, 0
      %p136 = por %p134, %p135
      %p137 = scmp.le.s32.totalorder 1, %s16
      %p138 = scmp.lt.s32.totalorder %s16, 3
      %p139 = pnand %p137, %p138
      %p140 = pneg %p139
      // Predicated region
      $region9: #{tpu_custom_call.1} parent=5 // pred_check
        _
      $region10: #{tpu_custom_call.1} parent=5 // pred_check_branch
        %142 = sbr.rel (%p139) target = $region12
      $region11: #{tpu_custom_call.1} parent=5 // pred_region
        %s143 = ssub.s32 %s16, 1
        // Predicated region
        $region13: #{tpu_custom_call.1} parent=11 // pred_check
          %p144 = pneg %p75
        $region14: #{tpu_custom_call.1} parent=11 // pred_check_branch
          %146 = sbr.rel (%p144) target = $region16
        $region15: #{tpu_custom_call.1} parent=11 // pred_region
          %s148 = ssub.s32 512, 512
          %149 = vsyncadd [#allocation7], %s148
          %s150 = sshll.u32 [#allocation6], 4
          %s151 = int_to_ptr.vmem [resolvable:$true] %s150
          %156 = dma.hbm_to_vmem [thread:$0]  %s1, 512, %s151, [#allocation7], 64, 64, 4
        $region16: #{tpu_custom_call.1} parent=11 // pred_fallthru
          _
        // Predicated region
        $region17: #{tpu_custom_call.1} parent=11 // pred_check
          %p157 = pneg %p101
        $region18: #{tpu_custom_call.1} parent=11 // pred_check_branch
          %159 = sbr.rel (%p157) target = $region20
        $region19: #{tpu_custom_call.1} parent=11 // pred_region
          %s161 = ssub.s32 1024, 1024
          %162 = vsyncadd [#allocation7], %s161
          %s163 = smul.addr %s26, 64
          %s164 = scalar_lea.hbm %s2, %s163
          %s165 = sshll.u32 [#allocation8], 4
          %s166 = int_to_ptr.vmem [resolvable:$true] %s165
          %171 = dma.hbm_to_vmem [thread:$0]  %s164, 1024, %s166, [#allocation7], 64, 64, 4
        $region20: #{tpu_custom_call.1} parent=11 // pred_fallthru
          _
      $region12: #{tpu_custom_call.1} parent=5 // pred_fallthru
        _
      %p172 = scmp.lt.s32.totalorder %s16, 2
      // Predicated region
      $region21: #{tpu_custom_call.1} parent=5 // pred_check
        %p173 = pneg %p172
      $region22: #{tpu_custom_call.1} parent=5 // pred_check_branch
        %175 = sbr.rel (%p173) target = $region24
      $region23: #{tpu_custom_call.1} parent=5 // pred_region
        // Predicated region
        $region25: #{tpu_custom_call.1} parent=23 // pred_check
          %p176 = pneg %p48
        $region26: #{tpu_custom_call.1} parent=23 // pred_check_branch
          %178 = sbr.rel (%p176) target = $region28
        $region27: #{tpu_custom_call.1} parent=23 // pred_region
          %s179 = sand.u32 %s38, 1
          %s180 = scalar_lea.sflag [#allocation4], %s179
          %s181 = sand.u32 %s38, 1
          %s182 = smul.addr %s181, 16
          %s183 = scalar_lea.vmem [#allocation3], %s182
          %s184 = smul.u32 4, %s23
          %s186 = ssub.s32 256, 256
          %187 = vsyncadd %s180, %s186
          %s188 = smul.addr %s184, 64
          %s189 = scalar_lea.hbm %s0, %s188
          %s190 = sshll.u32 %s183, 4
          %s191 = int_to_ptr.vmem [resolvable:$true] %s190
          %196 = dma.hbm_to_vmem [thread:$0]  %s189, 256, %s191, %s180, 64, 64, 4
        $region28: #{tpu_custom_call.1} parent=23 // pred_fallthru
          _
      $region24: #{tpu_custom_call.1} parent=5 // pred_fallthru
        _
      %p197 = scmp.le.s32.totalorder 1, %s16
      %p198 = scmp.lt.s32.totalorder %s16, 3
      %p199 = pnand %p197, %p198
      %p200 = pneg %p199
      // Predicated region
      $region29: #{tpu_custom_call.1} parent=5 // pred_check
        _
      $region30: #{tpu_custom_call.1} parent=5 // pred_check_branch
        %202 = sbr.rel (%p199) target = $region32
      $region31: #{tpu_custom_call.1} parent=5 // pred_region
        %s203 = ssub.s32 %s16, 1
        %s204 = sand.u32 %s41, 1
        %s205 = scalar_lea.sflag [#allocation4], %s204
        %s206 = sand.u32 %s41, 1
        %s207 = smul.addr %s206, 16
        %s208 = scalar_lea.vmem [#allocation3], %s207
        // Predicated region
        $region33: #{tpu_custom_call.1} parent=31 // pred_check
          %p209 = pneg %p54
        $region34: #{tpu_custom_call.1} parent=31 // pred_check_branch
          %211 = sbr.rel (%p209) target = $region36
        $region35: #{tpu_custom_call.1} parent=31 // pred_region
          %212 = dma.done %s205, 256
        $region36: #{tpu_custom_call.1} parent=31 // pred_fallthru
          _
        // Predicated region
        $region37: #{tpu_custom_call.1} parent=31 // pred_check
          %p213 = pneg %p75
        $region38: #{tpu_custom_call.1} parent=31 // pred_check_branch
          %215 = sbr.rel (%p213) target = $region40
        $region39: #{tpu_custom_call.1} parent=31 // pred_region
          %216 = dma.done [#allocation7], 512
        $region40: #{tpu_custom_call.1} parent=31 // pred_fallthru
          _
        // Predicated region
        $region41: #{tpu_custom_call.1} parent=31 // pred_check
          %p217 = pneg %p101
        $region42: #{tpu_custom_call.1} parent=31 // pred_check_branch
          %219 = sbr.rel (%p217) target = $region44
        $region43: #{tpu_custom_call.1} parent=31 // pred_region
          %220 = dma.done [#allocation7], 1024
        $region44: #{tpu_custom_call.1} parent=31 // pred_fallthru
          _
        %s221 = sand.u32 %s41, 1
        %s222 = scalar_lea.sflag [#allocation4], %s221
        %s223 = sand.u32 %s41, 1
        %s224 = smul.addr %s223, 16
        %s225 = scalar_lea.vmem [#allocation3], %s224
        %p226 = pneg %p54
        %p227 = pneg %p51
        %p228 = pneg %p75
        %p229 = pneg %p72
        %p230 = pneg %p101
        %p231 = pneg %p98
        %p232 = pneg %p129
        %p233 = pneg %p126
        %s234 = sand.u32 %s116, 1
        %s235 = scalar_lea.sflag [#allocation5], %s234
        %s236 = sand.u32 %s116, 1
        %s237 = smul.addr %s236, 32
        %s238 = scalar_lea.vmem [#allocation9], %s237
        %s239 = smul.u32 4, %s25
        %s240 = smul.u32 4, %s25
        %p242 = scmp.eq.s32.totalorder %s26, 0
        // Predicated region
        $region45: #{tpu_custom_call.1} parent=31 // pred_check
          %p243 = pneg %p242
        $region46: #{tpu_custom_call.1} parent=31 // pred_check_branch
          %245 = sbr.rel (%p243) target = $region48
        $region47: #{tpu_custom_call.1} parent=31 // pred_region
          %v246 = vld [vmem:[%s208] sm:$0xf]
          %v247 = vld [vmem:[%s208 + $0x4] sm:$0xf]
          %v248 = vld [vmem:[%s208 + $0x8] sm:$0xf]
          %v249 = vld [vmem:[%s208 + $0xc] sm:$0xf]
          %v250 = vld [vmem:[#allocation6] sm:$0xf]
          %v251 = vld [vmem:[#allocation6 + $0x4] sm:$0xf]
          %v252 = vld [vmem:[#allocation6 + $0x8] sm:$0xf]
          %v253 = vld [vmem:[#allocation6 + $0xc] sm:$0xf]
          %v254 = vld [vmem:[#allocation6 + $0x10] sm:$0xf]
          %v255 = vld [vmem:[#allocation6 + $0x14] sm:$0xf]
          %v256 = vld [vmem:[#allocation6 + $0x18] sm:$0xf]
          %v257 = vld [vmem:[#allocation6 + $0x1c] sm:$0xf]
          %v262 = vunpack.c.l.b16 %v246
          %v263 = vunpack.c.l.b16 %v247
          %v264 = vunpack.c.l.b16 %v248
          %v265 = vunpack.c.l.b16 %v249
          %v266 = vpack.c.b16 %v263, %v262
          %v267 = vpack.c.b16 %v265, %v264
          %v276 = vunpack.c.l.b16 %v250
          %v277 = vunpack.c.l.b16 %v251
          %v278 = vunpack.c.l.b16 %v252
          %v279 = vunpack.c.l.b16 %v253
          %v280 = vunpack.c.l.b16 %v254
          %v281 = vunpack.c.l.b16 %v255
          %v282 = vunpack.c.l.b16 %v256
          %v283 = vunpack.c.l.b16 %v257
          %v284 = vpack.c.b16 %v277, %v276
          %v285 = vpack.c.b16 %v279, %v278
          %v286 = vpack.c.b16 %v281, %v280
          %v287 = vpack.c.b16 %v283, %v282
          %vm292 = vcmask 523264
          %v294 = vsel %vm292, %v266, 0
          %v297 = vsel %vm292, %v267, 0
          %299 = vmatprep.subr.bf16.mxu0 0
          %300 = vmatpush1.bf16.msra.mxu0 0
          %301 = vmatprep.subr.bf16.mxu0 0
          %302 = vmatpush1.bf16.msra.mxu0 0
          %303 = vmatprep.subr.bf16.mxu0 0
          %304 = vmatpush1.bf16.msra.mxu0 0
          %305 = vmatprep.subr.bf16.mxu0 0
          %306 = vmatpush1.bf16.msra.mxu0 0
          %307 = vmatprep.subr.bf16.mxu0 0
          %308 = vmatpush1.bf16.msra.mxu0 %v287
          %309 = vmatprep.subr.bf16.mxu0 0
          %310 = vmatpush1.bf16.msra.mxu0 %v286
          %311 = vmatprep.subr.bf16.mxu0 0
          %312 = vmatpush1.bf16.msra.mxu0 %v285
          %313 = vmatprep.subr.bf16.mxu0 0
          %314 = vmatpush1.bf16.msra.mxu0 %v284
          %315 = vmatprep.subr.bf16.mxu0 0
          %316 = vmatpush2.bf16.msra.mxu0 0
          %317 = vmatprep.subr.bf16.mxu0 0
          %318 = vmatpush2.bf16.msra.mxu0 0
          %319 = vmatprep.subr.bf16.mxu0 0
          %320 = vmatpush2.bf16.msra.mxu0 0
          %321 = vmatprep.subr.bf16.mxu0 0
          %322 = vmatpush2.bf16.msra.mxu0 0
          %323 = vmatprep.subr.bf16.mxu0 0
          %324 = vmatpush2.bf16.msra.mxu0 0
          %325 = vmatprep.subr.bf16.mxu0 0
          %326 = vmatpush2.bf16.msra.mxu0 0
          %327 = vmatprep.subr.bf16.mxu0 0
          %328 = vmatpush2.bf16.msra.mxu0 0
          %329 = vmatprep.subr.bf16.mxu0 0
          %330 = vmatpush2.bf16.msra.mxu0 0
          %331 = vmatprep.mubr.bf16.mxu0 0
          %332 = vmatmul.mubr.bf16.gmra.mxu0 %v294
          %v333 = vpop.f32.mrf.mxu0
          %v334 = vadd.f32 0.0, %v333
          %v335 = vpop.f32.mrf.mxu0
          %v336 = vpop.f32.mrf.mxu0
          %v337 = vadd.f32 0.0, %v336
          %v338 = vpop.f32.mrf.mxu0
          %339 = vmatprep.mubr.bf16.mxu0 0
          %340 = vmatmul.mubr.bf16.gmra.mxu0 %v297
          %v341 = vpop.f32.mrf.mxu0
          %v342 = vadd.f32 0.0, %v341
          %v343 = vpop.f32.mrf.mxu0
          %v344 = vpop.f32.mrf.mxu0
          %v345 = vadd.f32 0.0, %v344
          %v346 = vpop.f32.mrf.mxu0
          %347 = vdwg.mxu0
          %v348 = vpack.c.bf16 %v337, %v334
          %v349 = vpack.c.bf16 %v345, %v342
          %v352 = vunpack.c.l.b16 %v348
          %v353 = vunpack.c.h.b16 %v348
          %v354 = vunpack.c.l.b16 %v349
          %v355 = vunpack.c.h.b16 %v349
          %v356 = vpack.c.b16 %v352, %v352
          %v357 = vpack.c.b16 %v353, %v353
          %v358 = vpack.c.b16 %v354, %v354
          %v359 = vpack.c.b16 %v355, %v355
          %364 = vst [vmem:[#allocation2] sm:$0xf] %v356
          %365 = vst [vmem:[#allocation2 + $0x4] sm:$0xf] %v357
          %366 = vst [vmem:[#allocation2 + $0x8] sm:$0xf] %v358
          %367 = vst [vmem:[#allocation2 + $0xc] sm:$0xf] %v359
        $region48: #{tpu_custom_call.1} parent=31 // pred_fallthru
          _
        %v368 = vld [vmem:[#allocation2] sm:$0xf]
        %v369 = vld [vmem:[#allocation2 + $0x4] sm:$0xf]
        %v370 = vld [vmem:[#allocation2 + $0x8] sm:$0xf]
        %v371 = vld [vmem:[#allocation2 + $0xc] sm:$0xf]
        %v372 = vld [vmem:[#allocation8] sm:$0xf]
        %v373 = vld [vmem:[#allocation8 + $0x4] sm:$0xf]
        %v374 = vld [vmem:[#allocation8 + $0x8] sm:$0xf]
        %v375 = vld [vmem:[#allocation8 + $0xc] sm:$0xf]
        %v376 = vld [vmem:[#allocation8 + $0x10] sm:$0xf]
        %v377 = vld [vmem:[#allocation8 + $0x14] sm:$0xf]
        %v378 = vld [vmem:[#allocation8 + $0x18] sm:$0xf]
        %v379 = vld [vmem:[#allocation8 + $0x1c] sm:$0xf]
        %v380 = vld [vmem:[#allocation8 + $0x20] sm:$0xf]
        %v381 = vld [vmem:[#allocation8 + $0x24] sm:$0xf]
        %v382 = vld [vmem:[#allocation8 + $0x28] sm:$0xf]
        %v383 = vld [vmem:[#allocation8 + $0x2c] sm:$0xf]
        %v384 = vld [vmem:[#allocation8 + $0x30] sm:$0xf]
        %v385 = vld [vmem:[#allocation8 + $0x34] sm:$0xf]
        %v386 = vld [vmem:[#allocation8 + $0x38] sm:$0xf]
        %v387 = vld [vmem:[#allocation8 + $0x3c] sm:$0xf]
        %v392 = vunpack.c.l.b16 %v368
        %v393 = vunpack.c.l.b16 %v369
        %v394 = vunpack.c.l.b16 %v370
        %v395 = vunpack.c.l.b16 %v371
        %v396 = vpack.c.b16 %v393, %v392
        %v397 = vpack.c.b16 %v395, %v394
        %v416 = vunpack.c.l.b16 %v372
        %v417 = vunpack.c.l.b16 %v373
        %v418 = vunpack.c.l.b16 %v374
        %v419 = vunpack.c.l.b16 %v375
        %v420 = vunpack.c.l.b16 %v376
        %v421 = vunpack.c.l.b16 %v377
        %v422 = vunpack.c.l.b16 %v378
        %v423 = vunpack.c.l.b16 %v379
        %v424 = vunpack.c.l.b16 %v380
        %v425 = vunpack.c.l.b16 %v381
        %v426 = vunpack.c.l.b16 %v382
        %v427 = vunpack.c.l.b16 %v383
        %v428 = vunpack.c.l.b16 %v384
        %v429 = vunpack.c.l.b16 %v385
        %v430 = vunpack.c.l.b16 %v386
        %v431 = vunpack.c.l.b16 %v387
        %v432 = vpack.c.b16 %v417, %v416
        %v433 = vpack.c.b16 %v419, %v418
        %v434 = vpack.c.b16 %v421, %v420
        %v435 = vpack.c.b16 %v423, %v422
        %v436 = vpack.c.b16 %v425, %v424
        %v437 = vpack.c.b16 %v427, %v426
        %v438 = vpack.c.b16 %v429, %v428
        %v439 = vpack.c.b16 %v431, %v430
        %448 = vmatprep.subr.bf16.mxu0 0
        %449 = vmatpush1.bf16.msra.mxu0 %v439
        %450 = vmatprep.subr.bf16.mxu0 0
        %451 = vmatpush1.bf16.msra.mxu0 %v438
        %452 = vmatprep.subr.bf16.mxu0 0
        %453 = vmatpush1.bf16.msra.mxu0 %v437
        %454 = vmatprep.subr.bf16.mxu0 0
        %455 = vmatpush1.bf16.msra.mxu0 %v436
        %456 = vmatprep.subr.bf16.mxu0 0
        %457 = vmatpush1.bf16.msra.mxu0 %v435
        %458 = vmatprep.subr.bf16.mxu0 0
        %459 = vmatpush1.bf16.msra.mxu0 %v434
        %460 = vmatprep.subr.bf16.mxu0 0
        %461 = vmatpush1.bf16.msra.mxu0 %v433
        %462 = vmatprep.subr.bf16.mxu0 0
        %463 = vmatpush1.bf16.msra.mxu0 %v432
        %464 = vmatprep.subr.bf16.mxu0 0
        %465 = vmatpush2.bf16.msra.mxu0 0
        %466 = vmatprep.subr.bf16.mxu0 0
        %467 = vmatpush2.bf16.msra.mxu0 0
        %468 = vmatprep.subr.bf16.mxu0 0
        %469 = vmatpush2.bf16.msra.mxu0 0
        %470 = vmatprep.subr.bf16.mxu0 0
        %471 = vmatpush2.bf16.msra.mxu0 0
        %472 = vmatprep.subr.bf16.mxu0 0
        %473 = vmatpush2.bf16.msra.mxu0 0
        %474 = vmatprep.subr.bf16.mxu0 0
        %475 = vmatpush2.bf16.msra.mxu0 0
        %476 = vmatprep.subr.bf16.mxu0 0
        %477 = vmatpush2.bf16.msra.mxu0 0
        %478 = vmatprep.subr.bf16.mxu0 0
        %479 = vmatpush2.bf16.msra.mxu0 0
        %480 = vmatprep.mubr.bf16.mxu0 0
        %481 = vmatmul.mubr.bf16.gmra.mxu0 %v396
        %v482 = vpop.f32.mrf.mxu0
        %v483 = vadd.f32 0.0, %v482
        %v484 = vpop.f32.mrf.mxu0
        %v485 = vpop.f32.mrf.mxu0
        %v486 = vadd.f32 0.0, %v485
        %v487 = vpop.f32.mrf.mxu0
        %488 = vmatprep.mubr.bf16.mxu0 0
        %489 = vmatmul.mubr.bf16.gmra.mxu0 %v397
        %v490 = vpop.f32.mrf.mxu0
        %v491 = vadd.f32 0.0, %v490
        %v492 = vpop.f32.mrf.mxu0
        %v493 = vpop.f32.mrf.mxu0
        %v494 = vadd.f32 0.0, %v493
        %v495 = vpop.f32.mrf.mxu0
        %496 = vdwg.mxu0
        %497 = vst [vmem:[%s238] sm:$0xff] %v483
        %498 = vst [vmem:[%s238 + $0x8] sm:$0xff] %v486
        %499 = vst [vmem:[%s238 + $0x10] sm:$0xff] %v491
        %500 = vst [vmem:[%s238 + $0x18] sm:$0xff] %v494
        %s501 = sand.u32 %s116, 1
        %s502 = scalar_lea.sflag [#allocation5], %s501
        %s503 = sand.u32 %s116, 1
        %s504 = smul.addr %s503, 32
        %s505 = scalar_lea.vmem [#allocation9], %s504
        // Predicated region
        $region49: #{tpu_custom_call.1} parent=31 // pred_check
          %p506 = pneg %p126
        $region50: #{tpu_custom_call.1} parent=31 // pred_check_branch
          %508 = sbr.rel (%p506) target = $region52
        $region51: #{tpu_custom_call.1} parent=31 // pred_region
          %s509 = smul.u32 4, %s25
          %s511 = ssub.s32 512, 512
          %512 = vsyncadd %s502, %s511
          %s513 = sadd.s32 %s26, %s509
          %s514 = smul.addr %s513, 128
          %s515 = scalar_lea.hbm %s3, %s514
          %s516 = sshll.u32 %s505, 4
          %s517 = int_to_ptr.vmem [resolvable:$true] %s516
          %522 = dma.vmem_to_hbm [thread:$0]  %s517, 512, %s515, %s502, 128, 128, 8
        $region52: #{tpu_custom_call.1} parent=31 // pred_fallthru
          _
      $region32: #{tpu_custom_call.1} parent=5 // pred_fallthru
        _
      %p523 = scmp.le.s32.totalorder 2, %s16
      // Predicated region
      $region53: #{tpu_custom_call.1} parent=5 // pred_check
        %p524 = pneg %p523
      $region54: #{tpu_custom_call.1} parent=5 // pred_check_branch
        %526 = sbr.rel (%p524) target = $region56
      $region55: #{tpu_custom_call.1} parent=5 // pred_region
        %s527 = ssub.s32 %s16, 2
        // Predicated region
        $region57: #{tpu_custom_call.1} parent=55 // pred_check
          %p528 = pneg %p132
        $region58: #{tpu_custom_call.1} parent=55 // pred_check_branch
          %530 = sbr.rel (%p528) target = $region60
        $region59: #{tpu_custom_call.1} parent=55 // pred_region
          %s531 = sand.u32 %s117, 1
          %s532 = scalar_lea.sflag [#allocation5], %s531
          %s533 = sand.u32 %s117, 1
          %s534 = smul.addr %s533, 32
          %s535 = scalar_lea.vmem [#allocation9], %s534
          %536 = dma.done %s532, 512
        $region60: #{tpu_custom_call.1} parent=55 // pred_fallthru
          _
      $region56: #{tpu_custom_call.1} parent=5 // pred_fallthru
        _
    $region6: #{tpu_custom_call.1} parent=1 // loop_footer
      %s20 = sadd.s32 1, %s16
    $region7: #{tpu_custom_call.1} parent=1 // loop_footer_branch
      %15 = sbr.rel target = $region3
    $region8: #{tpu_custom_call.1} parent=1 // loop_exit
      _
    %537 = vsyncpa [#allocation4], 1
    %s538 = scalar_lea.sflag [#allocation4], 1
    %539 = vsyncpa %s538, 1
    %540 = vsyncpa [#allocation7], 1
    %541 = vsyncpa [#allocation5], 1
    %s542 = scalar_lea.sflag [#allocation5], 1
    %543 = vsyncpa %s542, 1

// kernel: tpu_custom_call.1
$region0: #{tpu_custom_call.1}
  #allocation0 [shape = 'u32[]', space=smem, size = 0x4, offset = 0x4, fixed_abs, tag = 'smem constant byte address 0x4 - core index']
  #allocation1 [shape = 'u32[144,128]{1,0:T(1,128)}', space=vmem, size = 0x12000, scoped, tag = 'internal scratch']
  #allocation2 [shape = 'bf16[32,128]{1,0:T(8,128)(2,1)}', space=vmem, size = 0x2000, scoped, tag = 'scratch operand']
  %s0 = inlined_call_operand.hbm [shape: bf16[64,64], index: 0, kind: input, shape index: {}]
  %s1 = inlined_call_operand.hbm [shape: bf16[64,128], index: 1, kind: input, shape index: {}]
  %s2 = inlined_call_operand.hbm [shape: bf16[128,128], index: 2, kind: input, shape index: {}]
  %s3 = inlined_call_operand.hbm [shape: f32[64,128], index: 3, kind: output, shape index: {}]
  %s4 = sld [smem:[#allocation0]]
  $region61: #{tpu_custom_call.1} parent=0
    _
  %s6 = ssub.s32 1, %s4
  %s7 = scalar_select 0, %s6, %s4
  $region1: #{tpu_custom_call.1} parent=0
    #allocation3 [shape = 'u8[16384]{0}', space=vmem, size = 0x4000, scoped, tag = 'input window, operand 0']
    #allocation4 [shape = 's32[2]{0}', space=sflag, size = 0x8, scoped, tag = 'scoped memory for tpu_custom_call.1']
    #allocation5 [shape = 's32[2]{0}', space=sflag, size = 0x8, scoped, tag = 'scoped memory for tpu_custom_call.1']
    #allocation6 [shape = 'u8[16384]{0}', space=vmem, size = 0x4000, scoped, tag = 'input window, operand 1, single buffered']
    #allocation7 [shape = 's32[1]{0}', space=sflag, size = 0x4, scoped, tag = 'scoped memory for tpu_custom_call.1']
    #allocation8 [shape = 'u8[32768]{0}', space=vmem, size = 0x8000, scoped, tag = 'input window, operand 2, single buffered']
    #allocation9 [shape = 'u8[32768]{0}', space=vmem, size = 0x8000, scoped, tag = 'output window, operand 0']
    %8 = vsyncpa [#allocation4], 0
    %s9 = scalar_lea.sflag [#allocation4], 1
    %10 = vsyncpa %s9, 0
    %11 = vsyncpa [#allocation7], 0
    %12 = vsyncpa [#allocation5], 0
    %s13 = scalar_lea.sflag [#allocation5], 1
    %14 = vsyncpa %s13, 0
    loop: start=0, step=1, limit=4
    $region2: #{tpu_custom_call.1} parent=1 // loop_pre_header
      _
    $region3: #{tpu_custom_call.1} parent=1 // loop_header
      %s16 = sphi 0, %s20
      %p17 = scmp.ge.s32.totalorder %s16, 4
      %s23 = sphi 0, %s35
      %s24 = sphi 0, %s31
      %s25 = sphi 0, %s23
      %s26 = sphi 0, %s24
      %s27 = sphi 0, %s25
      %s28 = sphi 0, %s26
      %s38 = sphi 0, %s40
      %s41 = sphi 0, %s38
      %s42 = sphi 0, %s41
      %s58 = sphi 0, %s42
      %s62 = sphi 0, %s62
      %s64 = sphi 0, %s62
      %s65 = sphi 0, %s64
      %s79 = sphi 0, %s65
      %s85 = sphi 0, %s87
      %s88 = sphi 0, %s85
      %s89 = sphi 0, %s88
      %s105 = sphi 0, %s89
      %s113 = sphi 0, %s115
      %s116 = sphi 0, %s113
      %s117 = sphi 0, %s116
      %s133 = sphi 0, %s117
    $region4: #{tpu_custom_call.1} parent=1 // loop_header_branch
      %19 = sbr.rel (%p17) target = $region8
    $region5: #{tpu_custom_call.1} parent=1 // loop_body
      %s21 = ssub.s32 %s16, 1
      %s22 = ssub.s32 %s16, 2
      %s29 = sadd.s32 1, %s24
      %p30 = scmp.ge.s32.totalorder %s29, 1
      %s31 = scalar_select %p30, 0, %s29
      %s32 = sadd.s32 1, %s23
      %s33 = scalar_select %p30, %s32, %s23
      %p34 = scmp.ge.s32.totalorder %s33, 2
      %s35 = scalar_select %p34, 0, %s33
      %s36 = ssub.s32 %s23, %s35
      %p37 = scmp.eq.s32.totalorder %s36, 0
      %s39 = sadd.s32 %s38, 1
      %s40 = scalar_select %p37, %s38, %s39
      %p43 = pneg %p37
      %p44 = scmp.eq.s32.totalorder %s16, 1
      %p45 = por %p43, %p44
      %p46 = scmp.ne.s32.totalorder %s38, %s41
      %p47 = scmp.eq.s32.totalorder %s16, 0
      %p48 = por %p46, %p47
      %p49 = scmp.ne.s32.totalorder %s38, %s41
      %p50 = scmp.eq.s32.totalorder %s21, 1
      %p51 = por %p49, %p50
      %p52 = scmp.ne.s32.totalorder %s41, %s42
      %p53 = scmp.eq.s32.totalorder %s21, 0
      %p54 = por %p52, %p53
      %p55 = scmp.ne.s32.totalorder %s41, %s42
      %p56 = scmp.eq.s32.totalorder %s22, 1
      %p57 = por %p55, %p56
      %p59 = scmp.ne.s32.totalorder %s42, %s58
      %p60 = scmp.eq.s32.totalorder %s22, 0
      %p61 = por %p59, %p60
      %s63 = sadd.s32 %s62, 1
      %p66 = scmp.eq.s32.totalorder %s16, 1
      %p67 = scmp.ne.s32.totalorder %s62, %s64
      %p68 = scmp.eq.s32.totalorder %s16, 0
      %p69 = por %p67, %p68
      %p70 = scmp.ne.s32.totalorder %s62, %s64
      %p71 = scmp.eq.s32.totalorder %s21, 1
      %p72 = por %p70, %p71
      %p73 = scmp.ne.s32.totalorder %s64, %s65
      %p74 = scmp.eq.s32.totalorder %s21, 0
      %p75 = por %p73, %p74
      %p76 = scmp.ne.s32.totalorder %s64, %s65
      %p77 = scmp.eq.s32.totalorder %s22, 1
      %p78 = por %p76, %p77
      %p80 = scmp.ne.s32.totalorder %s65, %s79
      %p81 = scmp.eq.s32.totalorder %s22, 0
      %p82 = por %p80, %p81
      %s83 = ssub.s32 %s24, %s31
      %p84 = scmp.eq.s32.totalorder %s83, 0
      %s86 = sadd.s32 %s85, 1
      %s87 = scalar_select %p84, %s85, %s86
      %p90 = pneg %p84
      %p91 = scmp.eq.s32.totalorder %s16, 1
      %p92 = por %p90, %p91
      %p93 = scmp.ne.s32.totalorder %s85, %s88
      %p94 = scmp.eq.s32.totalorder %s16, 0
      %p95 = por %p93, %p94
      %p96 = scmp.ne.s32.totalorder %s85, %s88
      %p97 = scmp.eq.s32.totalorder %s21, 1
      %p98 = por %p96, %p97
      %p99 = scmp.ne.s32.totalorder %s88, %s89
      %p100 = scmp.eq.s32.totalorder %s21, 0
      %p101 = por %p99, %p100
      %p102 = scmp.ne.s32.totalorder %s88, %s89
      %p103 = scmp.eq.s32.totalorder %s22, 1
      %p104 = por %p102, %p103
      %p106 = scmp.ne.s32.totalorder %s89, %s105
      %p107 = scmp.eq.s32.totalorder %s22, 0
      %p108 = por %p106, %p107
      %s109 = ssub.s32 %s23, %s35
      %s110 = ssub.s32 %s24, %s31
      %s111 = sor.u32 %s109, %s110
      %p112 = scmp.eq.s32.totalorder %s111, 0
      %s114 = sadd.s32 %s113, 1
      %s115 = scalar_select %p112, %s113, %s114
      %p118 = pneg %p112
      %p119 = scmp.eq.s32.totalorder %s16, 1
      %p120 = por %p118, %p119
      %p121 = scmp.ne.s32.totalorder %s113, %s116
      %p122 = scmp.eq.s32.totalorder %s16, 0
      %p123 = por %p121, %p122
      %p124 = scmp.ne.s32.totalorder %s113, %s116
      %p125 = scmp.eq.s32.totalorder %s21, 1
      %p126 = por %p124, %p125
      %p127 = scmp.ne.s32.totalorder %s116, %s117
      %p128 = scmp.eq.s32.totalorder %s21, 0
      %p129 = por %p127, %p128
      %p130 = scmp.ne.s32.totalorder %s116, %s117
      %p131 = scmp.eq.s32.totalorder %s22, 1
      %p132 = por %p130, %p131
      %p134 = scmp.ne.s32.totalorder %s117, %s133
      %p135 = scmp.eq.s32.totalorder %s22, 0
      %p136 = por %p134, %p135
      %p137 = scmp.le.s32.totalorder 1, %s16
      %p138 = scmp.lt.s32.totalorder %s16, 3
      %p139 = pnand %p137, %p138
      %p140 = pneg %p139
      // Predicated region
      $region9: #{tpu_custom_call.1} parent=5 // pred_check
        _
      $region10: #{tpu_custom_call.1} parent=5 // pred_check_branch
        %142 = sbr.rel (%p139) target = $region12
      $region11: #{tpu_custom_call.1} parent=5 // pred_region
        %s143 = ssub.s32 %s16, 1
        // Predicated region
        $region13: #{tpu_custom_call.1} parent=11 // pred_check
          %p144 = pneg %p75
        $region14: #{tpu_custom_call.1} parent=11 // pred_check_branch
          %146 = sbr.rel (%p144) target = $region16
        $region15: #{tpu_custom_call.1} parent=11 // pred_region
          %s148 = ssub.s32 512, 512
          %149 = vsyncadd [#allocation7], %s148
          %s150 = sshll.u32 [#allocation6], 4
          %s151 = int_to_ptr.vmem [resolvable:$true] %s150
          %156 = dma.hbm_to_vmem [thread:$0]  %s1, 512, %s151, [#allocation7], 64, 64, 4
        $region16: #{tpu_custom_call.1} parent=11 // pred_fallthru
          _
        // Predicated region
        $region17: #{tpu_custom_call.1} parent=11 // pred_check
          %p157 = pneg %p101
        $region18: #{tpu_custom_call.1} parent=11 // pred_check_branch
          %159 = sbr.rel (%p157) target = $region20
        $region19: #{tpu_custom_call.1} parent=11 // pred_region
          %s161 = ssub.s32 1024, 1024
          %162 = vsyncadd [#allocation7], %s161
          %s163 = smul.addr %s26, 64
          %s164 = scalar_lea.hbm %s2, %s163
          %s165 = sshll.u32 [#allocation8], 4
          %s166 = int_to_ptr.vmem [resolvable:$true] %s165
          %171 = dma.hbm_to_vmem [thread:$0]  %s164, 1024, %s166, [#allocation7], 64, 64, 4
        $region20: #{tpu_custom_call.1} parent=11 // pred_fallthru
          _
      $region12: #{tpu_custom_call.1} parent=5 // pred_fallthru
        _
      %p172 = scmp.lt.s32.totalorder %s16, 2
      // Predicated region
      $region21: #{tpu_custom_call.1} parent=5 // pred_check
        %p173 = pneg %p172
      $region22: #{tpu_custom_call.1} parent=5 // pred_check_branch
        %175 = sbr.rel (%p173) target = $region24
      $region23: #{tpu_custom_call.1} parent=5 // pred_region
        // Predicated region
        $region25: #{tpu_custom_call.1} parent=23 // pred_check
          %p176 = pneg %p48
        $region26: #{tpu_custom_call.1} parent=23 // pred_check_branch
          %178 = sbr.rel (%p176) target = $region28
        $region27: #{tpu_custom_call.1} parent=23 // pred_region
          %s179 = sand.u32 %s38, 1
          %s180 = scalar_lea.sflag [#allocation4], %s179
          %s181 = sand.u32 %s38, 1
          %s182 = smul.addr %s181, 16
          %s183 = scalar_lea.vmem [#allocation3], %s182
          %s184 = smul.u32 4, %s23
          %s186 = ssub.s32 256, 256
          %187 = vsyncadd %s180, %s186
          %s188 = smul.addr %s184, 64
          %s189 = scalar_lea.hbm %s0, %s188
          %s190 = sshll.u32 %s183, 4
          %s191 = int_to_ptr.vmem [resolvable:$true] %s190
          %196 = dma.hbm_to_vmem [thread:$0]  %s189, 256, %s191, %s180, 64, 64, 4
        $region28: #{tpu_custom_call.1} parent=23 // pred_fallthru
          _
      $region24: #{tpu_custom_call.1} parent=5 // pred_fallthru
        _
      %p197 = scmp.le.s32.totalorder 1, %s16
      %p198 = scmp.lt.s32.totalorder %s16, 3
      %p199 = pnand %p197, %p198
      %p200 = pneg %p199
      // Predicated region
      $region29: #{tpu_custom_call.1} parent=5 // pred_check
        _
      $region30: #{tpu_custom_call.1} parent=5 // pred_check_branch
        %202 = sbr.rel (%p199) target = $region32
      $region31: #{tpu_custom_call.1} parent=5 // pred_region
        %s203 = ssub.s32 %s16, 1
        %s204 = sand.u32 %s41, 1
        %s205 = scalar_lea.sflag [#allocation4], %s204
        %s206 = sand.u32 %s41, 1
        %s207 = smul.addr %s206, 16
        %s208 = scalar_lea.vmem [#allocation3], %s207
        // Predicated region
        $region33: #{tpu_custom_call.1} parent=31 // pred_check
          %p209 = pneg %p54
        $region34: #{tpu_custom_call.1} parent=31 // pred_check_branch
          %211 = sbr.rel (%p209) target = $region36
        $region35: #{tpu_custom_call.1} parent=31 // pred_region
          %212 = dma.done %s205, 256
        $region36: #{tpu_custom_call.1} parent=31 // pred_fallthru
          _
        // Predicated region
        $region37: #{tpu_custom_call.1} parent=31 // pred_check
          %p213 = pneg %p75
        $region38: #{tpu_custom_call.1} parent=31 // pred_check_branch
          %215 = sbr.rel (%p213) target = $region40
        $region39: #{tpu_custom_call.1} parent=31 // pred_region
          %216 = dma.done [#allocation7], 512
        $region40: #{tpu_custom_call.1} parent=31 // pred_fallthru
          _
        // Predicated region
        $region41: #{tpu_custom_call.1} parent=31 // pred_check
          %p217 = pneg %p101
        $region42: #{tpu_custom_call.1} parent=31 // pred_check_branch
          %219 = sbr.rel (%p217) target = $region44
        $region43: #{tpu_custom_call.1} parent=31 // pred_region
          %220 = dma.done [#allocation7], 1024
        $region44: #{tpu_custom_call.1} parent=31 // pred_fallthru
          _
        %s221 = sand.u32 %s41, 1
        %s222 = scalar_lea.sflag [#allocation4], %s221
        %s223 = sand.u32 %s41, 1
        %s224 = smul.addr %s223, 16
        %s225 = scalar_lea.vmem [#allocation3], %s224
        %p226 = pneg %p54
        %p227 = pneg %p51
        %p228 = pneg %p75
        %p229 = pneg %p72
        %p230 = pneg %p101
        %p231 = pneg %p98
        %p232 = pneg %p129
        %p233 = pneg %p126
        %s234 = sand.u32 %s116, 1
        %s235 = scalar_lea.sflag [#allocation5], %s234
        %s236 = sand.u32 %s116, 1
        %s237 = smul.addr %s236, 32
        %s238 = scalar_lea.vmem [#allocation9], %s237
        %s239 = smul.u32 4, %s25
        %s240 = smul.u32 4, %s25
        %p242 = scmp.eq.s32.totalorder %s26, 0
        // Predicated region
        $region45: #{tpu_custom_call.1} parent=31 // pred_check
          %p243 = pneg %p242
        $region46: #{tpu_custom_call.1} parent=31 // pred_check_branch
          %245 = sbr.rel (%p243) target = $region48
        $region47: #{tpu_custom_call.1} parent=31 // pred_region
          %v246 = vld [vmem:[%s208] sm:$0xf]
          %v247 = vld [vmem:[%s208 + $0x4] sm:$0xf]
          %v248 = vld [vmem:[%s208 + $0x8] sm:$0xf]
          %v249 = vld [vmem:[%s208 + $0xc] sm:$0xf]
          %v250 = vld [vmem:[#allocation6] sm:$0xf]
          %v251 = vld [vmem:[#allocation6 + $0x4] sm:$0xf]
          %v252 = vld [vmem:[#allocation6 + $0x8] sm:$0xf]
          %v253 = vld [vmem:[#allocation6 + $0xc] sm:$0xf]
          %v254 = vld [vmem:[#allocation6 + $0x10] sm:$0xf]
          %v255 = vld [vmem:[#allocation6 + $0x14] sm:$0xf]
          %v256 = vld [vmem:[#allocation6 + $0x18] sm:$0xf]
          %v257 = vld [vmem:[#allocation6 + $0x1c] sm:$0xf]
          %v262 = vunpack.c.l.b16 %v246
          %v263 = vunpack.c.l.b16 %v247
          %v264 = vunpack.c.l.b16 %v248
          %v265 = vunpack.c.l.b16 %v249
          %v266 = vpack.c.b16 %v263, %v262
          %v267 = vpack.c.b16 %v265, %v264
          %v276 = vunpack.c.l.b16 %v250
          %v277 = vunpack.c.l.b16 %v251
          %v278 = vunpack.c.l.b16 %v252
          %v279 = vunpack.c.l.b16 %v253
          %v280 = vunpack.c.l.b16 %v254
          %v281 = vunpack.c.l.b16 %v255
          %v282 = vunpack.c.l.b16 %v256
          %v283 = vunpack.c.l.b16 %v257
          %v284 = vpack.c.b16 %v277, %v276
          %v285 = vpack.c.b16 %v279, %v278
          %v286 = vpack.c.b16 %v281, %v280
          %v287 = vpack.c.b16 %v283, %v282
          %vm292 = vcmask 523264
          %v294 = vsel %vm292, %v266, 0
          %v297 = vsel %vm292, %v267, 0
          %299 = vmatprep.subr.bf16.mxu0 0
          %300 = vmatpush1.bf16.msra.mxu0 0
          %301 = vmatprep.subr.bf16.mxu0 0
          %302 = vmatpush1.bf16.msra.mxu0 0
          %303 = vmatprep.subr.bf16.mxu0 0
          %304 = vmatpush1.bf16.msra.mxu0 0
          %305 = vmatprep.subr.bf16.mxu0 0
          %306 = vmatpush1.bf16.msra.mxu0 0
          %307 = vmatprep.subr.bf16.mxu0 0
          %308 = vmatpush1.bf16.msra.mxu0 %v287
          %309 = vmatprep.subr.bf16.mxu0 0
          %310 = vmatpush1.bf16.msra.mxu0 %v286
          %311 = vmatprep.subr.bf16.mxu0 0
          %312 = vmatpush1.bf16.msra.mxu0 %v285
          %313 = vmatprep.subr.bf16.mxu0 0
          %314 = vmatpush1.bf16.msra.mxu0 %v284
          %315 = vmatprep.subr.bf16.mxu0 0
          %316 = vmatpush2.bf16.msra.mxu0 0
          %317 = vmatprep.subr.bf16.mxu0 0
          %318 = vmatpush2.bf16.msra.mxu0 0
          %319 = vmatprep.subr.bf16.mxu0 0
          %320 = vmatpush2.bf16.msra.mxu0 0
          %321 = vmatprep.subr.bf16.mxu0 0
          %322 = vmatpush2.bf16.msra.mxu0 0
          %323 = vmatprep.subr.bf16.mxu0 0
          %324 = vmatpush2.bf16.msra.mxu0 0
          %325 = vmatprep.subr.bf16.mxu0 0
          %326 = vmatpush2.bf16.msra.mxu0 0
          %327 = vmatprep.subr.bf16.mxu0 0
          %328 = vmatpush2.bf16.msra.mxu0 0
          %329 = vmatprep.subr.bf16.mxu0 0
          %330 = vmatpush2.bf16.msra.mxu0 0
          %331 = vmatprep.mubr.bf16.mxu0 0
          %332 = vmatmul.mubr.bf16.gmra.mxu0 %v294
          %v333 = vpop.f32.mrf.mxu0
          %v334 = vadd.f32 0.0, %v333
          %v335 = vpop.f32.mrf.mxu0
          %v336 = vpop.f32.mrf.mxu0
          %v337 = vadd.f32 0.0, %v336
          %v338 = vpop.f32.mrf.mxu0
          %339 = vmatprep.mubr.bf16.mxu0 0
          %340 = vmatmul.mubr.bf16.gmra.mxu0 %v297
          %v341 = vpop.f32.mrf.mxu0
          %v342 = vadd.f32 0.0, %v341
          %v343 = vpop.f32.mrf.mxu0
          %v344 = vpop.f32.mrf.mxu0
          %v345 = vadd.f32 0.0, %v344
          %v346 = vpop.f32.mrf.mxu0
          %347 = vdwg.mxu0
          %v348 = vpack.c.bf16 %v337, %v334
          %v349 = vpack.c.bf16 %v345, %v342
          %v352 = vunpack.c.l.b16 %v348
          %v353 = vunpack.c.h.b16 %v348
          %v354 = vunpack.c.l.b16 %v349
          %v355 = vunpack.c.h.b16 %v349
          %v356 = vpack.c.b16 %v352, %v352
          %v357 = vpack.c.b16 %v353, %v353
          %v358 = vpack.c.b16 %v354, %v354
          %v359 = vpack.c.b16 %v355, %v355
          %364 = vst [vmem:[#allocation2] sm:$0xf] %v356
          %365 = vst [vmem:[#allocation2 + $0x4] sm:$0xf] %v357
          %366 = vst [vmem:[#allocation2 + $0x8] sm:$0xf] %v358
          %367 = vst [vmem:[#allocation2 + $0xc] sm:$0xf] %v359
        $region48: #{tpu_custom_call.1} parent=31 // pred_fallthru
          _
        %v368 = vld [vmem:[#allocation2] sm:$0xf]
        %v369 = vld [vmem:[#allocation2 + $0x4] sm:$0xf]
        %v370 = vld [vmem:[#allocation2 + $0x8] sm:$0xf]
        %v371 = vld [vmem:[#allocation2 + $0xc] sm:$0xf]
        %v372 = vld [vmem:[#allocation8] sm:$0xf]
        %v373 = vld [vmem:[#allocation8 + $0x4] sm:$0xf]
        %v374 = vld [vmem:[#allocation8 + $0x8] sm:$0xf]
        %v375 = vld [vmem:[#allocation8 + $0xc] sm:$0xf]
        %v376 = vld [vmem:[#allocation8 + $0x10] sm:$0xf]
        %v377 = vld [vmem:[#allocation8 + $0x14] sm:$0xf]
        %v378 = vld [vmem:[#allocation8 + $0x18] sm:$0xf]
        %v379 = vld [vmem:[#allocation8 + $0x1c] sm:$0xf]
        %v380 = vld [vmem:[#allocation8 + $0x20] sm:$0xf]
        %v381 = vld [vmem:[#allocation8 + $0x24] sm:$0xf]
        %v382 = vld [vmem:[#allocation8 + $0x28] sm:$0xf]
        %v383 = vld [vmem:[#allocation8 + $0x2c] sm:$0xf]
        %v384 = vld [vmem:[#allocation8 + $0x30] sm:$0xf]
        %v385 = vld [vmem:[#allocation8 + $0x34] sm:$0xf]
        %v386 = vld [vmem:[#allocation8 + $0x38] sm:$0xf]
        %v387 = vld [vmem:[#allocation8 + $0x3c] sm:$0xf]
        %v392 = vunpack.c.l.b16 %v368
        %v393 = vunpack.c.l.b16 %v369
        %v394 = vunpack.c.l.b16 %v370
        %v395 = vunpack.c.l.b16 %v371
        %v396 = vpack.c.b16 %v393, %v392
        %v397 = vpack.c.b16 %v395, %v394
        %v416 = vunpack.c.l.b16 %v372
        %v417 = vunpack.c.l.b16 %v373
        %v418 = vunpack.c.l.b16 %v374
        %v419 = vunpack.c.l.b16 %v375
        %v420 = vunpack.c.l.b16 %v376
        %v421 = vunpack.c.l.b16 %v377
        %v422 = vunpack.c.l.b16 %v378
        %v423 = vunpack.c.l.b16 %v379
        %v424 = vunpack.c.l.b16 %v380
        %v425 = vunpack.c.l.b16 %v381
        %v426 = vunpack.c.l.b16 %v382
        %v427 = vunpack.c.l.b16 %v383
        %v428 = vunpack.c.l.b16 %v384
        %v429 = vunpack.c.l.b16 %v385
        %v430 = vunpack.c.l.b16 %v386
        %v431 = vunpack.c.l.b16 %v387
        %v432 = vpack.c.b16 %v417, %v416
        %v433 = vpack.c.b16 %v419, %v418
        %v434 = vpack.c.b16 %v421, %v420
        %v435 = vpack.c.b16 %v423, %v422
        %v436 = vpack.c.b16 %v425, %v424
        %v437 = vpack.c.b16 %v427, %v426
        %v438 = vpack.c.b16 %v429, %v428
        %v439 = vpack.c.b16 %v431, %v430
        %448 = vmatprep.subr.bf16.mxu0 0
        %449 = vmatpush1.bf16.msra.mxu0 %v439
        %450 = vmatprep.subr.bf16.mxu0 0
        %451 = vmatpush1.bf16.msra.mxu0 %v438
        %452 = vmatprep.subr.bf16.mxu0 0
        %453 = vmatpush1.bf16.msra.mxu0 %v437
        %454 = vmatprep.subr.bf16.mxu0 0
        %455 = vmatpush1.bf16.msra.mxu0 %v436
        %456 = vmatprep.subr.bf16.mxu0 0
        %457 = vmatpush1.bf16.msra.mxu0 %v435
        %458 = vmatprep.subr.bf16.mxu0 0
        %459 = vmatpush1.bf16.msra.mxu0 %v434
        %460 = vmatprep.subr.bf16.mxu0 0
        %461 = vmatpush1.bf16.msra.mxu0 %v433
        %462 = vmatprep.subr.bf16.mxu0 0
        %463 = vmatpush1.bf16.msra.mxu0 %v432
        %464 = vmatprep.subr.bf16.mxu0 0
        %465 = vmatpush2.bf16.msra.mxu0 0
        %466 = vmatprep.subr.bf16.mxu0 0
        %467 = vmatpush2.bf16.msra.mxu0 0
        %468 = vmatprep.subr.bf16.mxu0 0
        %469 = vmatpush2.bf16.msra.mxu0 0
        %470 = vmatprep.subr.bf16.mxu0 0
        %471 = vmatpush2.bf16.msra.mxu0 0
        %472 = vmatprep.subr.bf16.mxu0 0
        %473 = vmatpush2.bf16.msra.mxu0 0
        %474 = vmatprep.subr.bf16.mxu0 0
        %475 = vmatpush2.bf16.msra.mxu0 0
        %476 = vmatprep.subr.bf16.mxu0 0
        %477 = vmatpush2.bf16.msra.mxu0 0
        %478 = vmatprep.subr.bf16.mxu0 0
        %479 = vmatpush2.bf16.msra.mxu0 0
        %480 = vmatprep.mubr.bf16.mxu0 0
        %481 = vmatmul.mubr.bf16.gmra.mxu0 %v396
        %v482 = vpop.f32.mrf.mxu0
        %v483 = vadd.f32 0.0, %v482
        %v484 = vpop.f32.mrf.mxu0
        %v485 = vpop.f32.mrf.mxu0
        %v486 = vadd.f32 0.0, %v485
        %v487 = vpop.f32.mrf.mxu0
        %488 = vmatprep.mubr.bf16.mxu0 0
        %489 = vmatmul.mubr.bf16.gmra.mxu0 %v397
        %v490 = vpop.f32.mrf.mxu0
        %v491 = vadd.f32 0.0, %v490
        %v492 = vpop.f32.mrf.mxu0
        %v493 = vpop.f32.mrf.mxu0
        %v494 = vadd.f32 0.0, %v493
        %v495 = vpop.f32.mrf.mxu0
        %496 = vdwg.mxu0
        %497 = vst [vmem:[%s238] sm:$0xff] %v483
        %498 = vst [vmem:[%s238 + $0x8] sm:$0xff] %v486
        %499 = vst [vmem:[%s238 + $0x10] sm:$0xff] %v491
        %500 = vst [vmem:[%s238 + $0x18] sm:$0xff] %v494
        %s501 = sand.u32 %s116, 1
        %s502 = scalar_lea.sflag [#allocation5], %s501
        %s503 = sand.u32 %s116, 1
        %s504 = smul.addr %s503, 32
        %s505 = scalar_lea.vmem [#allocation9], %s504
        // Predicated region
        $region49: #{tpu_custom_call.1} parent=31 // pred_check
          %p506 = pneg %p126
        $region50: #{tpu_custom_call.1} parent=31 // pred_check_branch
          %508 = sbr.rel (%p506) target = $region52
        $region51: #{tpu_custom_call.1} parent=31 // pred_region
          %s509 = smul.u32 4, %s25
          %s511 = ssub.s32 512, 512
          %512 = vsyncadd %s502, %s511
          %s513 = sadd.s32 %s26, %s509
          %s514 = smul.addr %s513, 128
          %s515 = scalar_lea.hbm %s3, %s514
          %s516 = sshll.u32 %s505, 4
          %s517 = int_to_ptr.vmem [resolvable:$true] %s516
          %522 = dma.vmem_to_hbm [thread:$0]  %s517, 512, %s515, %s502, 128, 128, 8
        $region52: #{tpu_custom_call.1} parent=31 // pred_fallthru
          _
      $region32: #{tpu_custom_call.1} parent=5 // pred_fallthru
        _
      %p523 = scmp.le.s32.totalorder 2, %s16
      // Predicated region
      $region53: #{tpu_custom_call.1} parent=5 // pred_check
        %p524 = pneg %p523
      $region54: #{tpu_custom_call.1} parent=5 // pred_check_branch
        %526 = sbr.rel (%p524) target = $region56
      $region55: #{tpu_custom_call.1} parent=5 // pred_region
        %s527 = ssub.s32 %s16, 2
        // Predicated region
        $region57: #{tpu_custom_call.1} parent=55 // pred_check
          %p528 = pneg %p132
        $region58: #{tpu_custom_call.1} parent=55 // pred_check_branch
          %530 = sbr.rel (%p528) target = $region60
        $region59: #{tpu_custom_call.1} parent=55 // pred_region
          %s531 = sand.u32 %s117, 1
          %s532 = scalar_lea.sflag [#allocation5], %s531
          %s533 = sand.u32 %s117, 1
          %s534 = smul.addr %s533, 32
          %s535 = scalar_lea.vmem [#allocation9], %s534
          %536 = dma.done %s532, 512
        $region60: #{tpu_custom_call.1} parent=55 // pred_fallthru
          _
      $region56: #{tpu_custom_call.1} parent=5 // pred_fallthru
        _
    $region6: #{tpu_custom_call.1} parent=1 // loop_footer
      %s20 = sadd.s32 1, %s16
    $region7: #{tpu_custom_call.1} parent=1 // loop_footer_branch
      %15 = sbr.rel target = $region3
    $region8: #{tpu_custom_call.1} parent=1 // loop_exit
      _
    %537 = vsyncpa [#allocation4], 1
    %s538 = scalar_lea.sflag [#allocation4], 1
    %539 = vsyncpa %s538, 1
    %540 = vsyncpa [#allocation7], 1
    %541 = vsyncpa [#allocation5], 1
    %s542 = scalar_lea.sflag [#allocation5], 1
    %543 = vsyncpa %s542, 1

</llo_original>
